<compile_context>
chip_gen: v6e
topology: v6e:2x2x1
jax: 0.10.0
libtpu: 0.0.40
codegen_flags: <defaults>
</compile_context>

<pallas_src>
import jax
import jax.numpy as jnp
from jax.experimental import pallas as pl
from jax.experimental.pallas import tpu as pltpu

# Tile geometry: last two dims are multiples of (8, 128); 512*512*4B = 1 MiB.
TILE_R = 512
LANES = 512


def _linreg_kernel(w_ref, b_ref, x_ref, o_ref):
    # w_ref / b_ref: shape-(1,) scalars in SMEM (same values every grid step).
    # x_ref / o_ref: one (TILE_R, LANES) VMEM tile of the lane-dense slab.
    # The whole forward pass is a single VPU FMA per element.
    w = w_ref[0]
    b = b_ref[0]
    o_ref[...] = w * x_ref[...] + b


def linear_regression_forward(x: jax.Array, weights: jax.Array, bias: jax.Array) -> jax.Array:
    """Elementwise w * x + b (same broadcast semantics as the PyTorch module).

    x may have any shape; weights/bias are shape-(1,) float32.
    """
    orig_shape = x.shape
    dtype = x.dtype

    n = x.size
    tile_elems = TILE_R * LANES

    # Flatten and pad up to a whole number of tiles (lane-dense, (8,128)-aligned).
    flat = x.reshape(-1)
    n_tiles = max(1, pl.cdiv(n, tile_elems))
    padded = n_tiles * tile_elems
    if padded != n:
        flat = jnp.pad(flat, (0, padded - n))

    rows = padded // LANES
    slab = flat.reshape(rows, LANES)

    out_slab = pl.pallas_call(
        _linreg_kernel,
        out_shape=jax.ShapeDtypeStruct((rows, LANES), dtype),
        grid=(rows // TILE_R,),
        in_specs=[
            pl.BlockSpec(memory_space=pltpu.SMEM),                 # weights (1,)
            pl.BlockSpec(memory_space=pltpu.SMEM),                 # bias (1,)
            pl.BlockSpec((TILE_R, LANES), lambda i: (i, 0)),       # x tile
        ],
        out_specs=pl.BlockSpec((TILE_R, LANES), lambda i: (i, 0)),  # y tile
        compiler_params=pltpu.CompilerParams(
            dimension_semantics=("parallel",),
        ),
    )(weights, bias, slab)

    # Drop padding and restore the caller's original shape.
    return out_slab.reshape(-1)[:n].reshape(orig_shape)


if __name__ == "__main__":
    key = jax.random.PRNGKey(0)
    kw, kb = jax.random.split(key, 2)

    # Parameter init mirroring nn.Parameter(torch.randn(1)).
    weights = jax.random.normal(kw, (1,), dtype=jnp.float32)
    bias = jax.random.normal(kb, (1,), dtype=jnp.float32)

    # Small input matching the tutorial's X = arange(0, 1, 0.02).unsqueeze(1) -> (50, 1).
    x_small = (jnp.arange(0, 50, dtype=jnp.float32) * 0.02)[:, None]

    out_small = jax.block_until_ready(linear_regression_forward(x_small, weights, bias))
    ref_small = weights * x_small + bias
    assert out_small.shape == x_small.shape and out_small.dtype == x_small.dtype
    assert jnp.allclose(out_small, ref_small, atol=1e-6), "mismatch vs reference (small)"

    # Second check exercising the multi-tile grid path (>= 2 grid steps).
    x_med = jax.random.normal(jax.random.PRNGKey(1), (2048, 130), dtype=jnp.float32)
    out_med = jax.block_until_ready(linear_regression_forward(x_med, weights, bias))
    ref_med = weights * x_med + bias
    assert out_med.shape == x_med.shape
    assert jnp.allclose(out_med, ref_med, atol=1e-6), "mismatch vs reference (multi-tile)"

    print("KERNEL_OK")
</pallas_src>

<mosaic_0001>
module attributes {stable_mosaic.version = 11 : i64} {
  func.func @_linreg_kernel(%arg0: i32, %arg1: memref<1xf32, #tpu.memory_space<smem>>, %arg2: memref<1xf32, #tpu.memory_space<smem>>, %arg3: memref<512x512xf32, #tpu.memory_space<vmem>>, %arg4: memref<512x512xf32, #tpu.memory_space<vmem>>) attributes {dimension_semantics = [#tpu.dimension_semantics<parallel>], iteration_bounds = array<i64: 1>, scalar_prefetch = 0 : i64, scratch_operands = 0 : i64, tpu.core_type = #tpu.core_type<tc>, window_params = [{transform_indices = @transform_0, window_bounds = array<i64: 1>}, {transform_indices = @transform_1, window_bounds = array<i64: 1>}, {transform_indices = @transform_2, window_bounds = array<i64: 512, 512>}, {transform_indices = @transform_3, window_bounds = array<i64: 512, 512>}]} {
    %c0 = arith.constant 0 : index
    %0 = memref.load %arg1[%c0] : memref<1xf32, #tpu.memory_space<smem>>
    %c0_0 = arith.constant 0 : index
    %1 = memref.load %arg2[%c0_0] : memref<1xf32, #tpu.memory_space<smem>>
    %c0_1 = arith.constant 0 : index
    %c0_2 = arith.constant 0 : index
    %2 = vector.load %arg3[%c0_1, %c0_2] : memref<512x512xf32, #tpu.memory_space<vmem>>, vector<512x512xf32>
    %3 = vector.broadcast %0 : f32 to vector<512x512xf32>
    %4 = arith.mulf %3, %2 : vector<512x512xf32>
    %5 = vector.broadcast %1 : f32 to vector<512x512xf32>
    %6 = arith.addf %4, %5 : vector<512x512xf32>
    %c0_3 = arith.constant 0 : index
    %c0_4 = arith.constant 0 : index
    %7 = vector.load %arg4[%c0_3, %c0_4] : memref<512x512xf32, #tpu.memory_space<vmem>>, vector<512x512xf32>
    tpu.vector_store %arg4[%c0_3, %c0_4], %6 {strides = array<i32>} : memref<512x512xf32, #tpu.memory_space<vmem>>, vector<512x512xf32>,
    return
  }
  func.func @transform_0(%arg0: i32) -> i32 {
    %c0_i32 = arith.constant 0 : i32
    %c0_i32_0 = arith.constant 0 : i32
    return %c0_i32 : i32
  }
  func.func @transform_1(%arg0: i32) -> i32 {
    %c0_i32 = arith.constant 0 : i32
    %c0_i32_0 = arith.constant 0 : i32
    return %c0_i32 : i32
  }
  func.func @transform_2(%arg0: i32) -> (i32, i32) {
    %c0_i32 = arith.constant 0 : i32
    %c0_i32_0 = arith.constant 0 : i32
    return %arg0, %c0_i32 : i32, i32
  }
  func.func @transform_3(%arg0: i32) -> (i32, i32) {
    %c0_i32 = arith.constant 0 : i32
    %c0_i32_0 = arith.constant 0 : i32
    return %arg0, %c0_i32 : i32, i32
  }
}

</mosaic_0001>

<llo_original>
// kernel: tpu_custom_call.1
$region0: #{tpu_custom_call.1}
  #allocation0 [shape = 'u32[]', space=smem, size = 0x4, offset = 0x4, fixed_abs, tag = 'smem constant byte address 0x4 - core index']
  #allocation1 [shape = 'u32[144,128]{1,0:T(1,128)}', space=vmem, size = 0x12000, scoped, tag = 'internal scratch']
  #allocation2 [shape = 'f32[1]{0:T(128)S(6)}', space=smem, size = 0x200, scoped, tag = 'scoped memory for tpu_custom_call.1']
  #allocation3 [shape = 'f32[1]{0:T(128)S(6)}', space=smem, size = 0x200, scoped, tag = 'scoped memory for tpu_custom_call.1']
  %s0 = inlined_call_operand.<no memory space> [shape: f32[1], index: 0, kind: input, shape index: {}]
  %s1 = inlined_call_operand.<no memory space> [shape: f32[1], index: 1, kind: input, shape index: {}]
  %s2 = inlined_call_operand.hbm [shape: f32[512,512], index: 2, kind: input, shape index: {}]
  %s3 = inlined_call_operand.hbm [shape: f32[512,512], index: 3, kind: output, shape index: {}]
  %s4 = sld [smem:[#allocation0]]
  $region26: #{tpu_custom_call.1} parent=0
    _
  %s6 = ssub.s32 1, %s4
  %s7 = scalar_select 0, %s6, %s4
  %8 = sst [smem:[#allocation2]] %s0
  %9 = sst [smem:[#allocation3]] %s1
  $region1: #{tpu_custom_call.1} parent=0
    #allocation4 [shape = 'u8[1048576]{0}', space=vmem, size = 0x100000, scoped, tag = 'input window, operand 2, single buffered']
    #allocation5 [shape = 's32[1]{0}', space=sflag, size = 0x4, scoped, tag = 'scoped memory for tpu_custom_call.1']
    #allocation6 [shape = 's32[1]{0}', space=sflag, size = 0x4, scoped, tag = 'scoped memory for tpu_custom_call.1']
    #allocation7 [shape = 'u8[1048576]{0}', space=vmem, size = 0x100000, scoped, tag = 'output window, operand 0, single buffered']
    %10 = vsyncpa [#allocation5], 0
    %11 = vsyncpa [#allocation6], 0
    // Predicated region
    $region2: #{tpu_custom_call.1} parent=1 // pred_check
      _
    $region3: #{tpu_custom_call.1} parent=1 // pred_check_branch
      %13 = sbr.rel (0) target = $region5
    $region4: #{tpu_custom_call.1} parent=1 // pred_region
      _
    $region5: #{tpu_custom_call.1} parent=1 // pred_fallthru
      _
    // Predicated region
    $region6: #{tpu_custom_call.1} parent=1 // pred_check
      _
    $region7: #{tpu_custom_call.1} parent=1 // pred_check_branch
      %15 = sbr.rel (0) target = $region9
    $region8: #{tpu_custom_call.1} parent=1 // pred_region
      _
    $region9: #{tpu_custom_call.1} parent=1 // pred_fallthru
      _
    // Predicated region
    $region10: #{tpu_custom_call.1} parent=1 // pred_check
      _
    $region11: #{tpu_custom_call.1} parent=1 // pred_check_branch
      %17 = sbr.rel (0) target = $region13
    $region12: #{tpu_custom_call.1} parent=1 // pred_region
      %s19 = ssub.s32 32768, 32768
      %20 = vsyncadd [#allocation5], %s19
      %s21 = sshll.u32 [#allocation4], 4
      %s22 = int_to_ptr.vmem [resolvable:$true] %s21
      %27 = dma.hbm_to_vmem [thread:$0]  %s2, 32768, %s22, [#allocation5], 512, 512, 32
    $region13: #{tpu_custom_call.1} parent=1 // pred_fallthru
      _
    // Predicated region
    $region14: #{tpu_custom_call.1} parent=1 // pred_check
      _
    $region15: #{tpu_custom_call.1} parent=1 // pred_check_branch
      %29 = sbr.rel (0) target = $region17
    $region16: #{tpu_custom_call.1} parent=1 // pred_region
      %30 = dma.done [#allocation5], 32768
    $region17: #{tpu_custom_call.1} parent=1 // pred_fallthru
      _
    %s31 = sld [smem:[#allocation2]]
    %s32 = sld [smem:[#allocation3]]
    %v33 = vld [vmem:[#allocation4] sm:$0xff]
    %v34 = vld [vmem:[#allocation4 + $0x8] sm:$0xff]
    %v35 = vld [vmem:[#allocation4 + $0x10] sm:$0xff]
    %v36 = vld [vmem:[#allocation4 + $0x18] sm:$0xff]
    %v37 = vld [vmem:[#allocation4 + $0x20] sm:$0xff]
    %v38 = vld [vmem:[#allocation4 + $0x28] sm:$0xff]
    %v39 = vld [vmem:[#allocation4 + $0x30] sm:$0xff]
    %v40 = vld [vmem:[#allocation4 + $0x38] sm:$0xff]
    %v41 = vld [vmem:[#allocation4 + $0x40] sm:$0xff]
    %v42 = vld [vmem:[#allocation4 + $0x48] sm:$0xff]
    %v43 = vld [vmem:[#allocation4 + $0x50] sm:$0xff]
    %v44 = vld [vmem:[#allocation4 + $0x58] sm:$0xff]
    %v45 = vld [vmem:[#allocation4 + $0x60] sm:$0xff]
    %v46 = vld [vmem:[#allocation4 + $0x68] sm:$0xff]
    %v47 = vld [vmem:[#allocation4 + $0x70] sm:$0xff]
    %v48 = vld [vmem:[#allocation4 + $0x78] sm:$0xff]
    %v49 = vld [vmem:[#allocation4 + $0x80] sm:$0xff]
    %v50 = vld [vmem:[#allocation4 + $0x88] sm:$0xff]
    %v51 = vld [vmem:[#allocation4 + $0x90] sm:$0xff]
    %v52 = vld [vmem:[#allocation4 + $0x98] sm:$0xff]
    %v53 = vld [vmem:[#allocation4 + $0xa0] sm:$0xff]
    %v54 = vld [vmem:[#allocation4 + $0xa8] sm:$0xff]
    %v55 = vld [vmem:[#allocation4 + $0xb0] sm:$0xff]
    %v56 = vld [vmem:[#allocation4 + $0xb8] sm:$0xff]
    %v57 = vld [vmem:[#allocation4 + $0xc0] sm:$0xff]
    %v58 = vld [vmem:[#allocation4 + $0xc8] sm:$0xff]
    %v59 = vld [vmem:[#allocation4 + $0xd0] sm:$0xff]
    %v60 = vld [vmem:[#allocation4 + $0xd8] sm:$0xff]
    %v61 = vld [vmem:[#allocation4 + $0xe0] sm:$0xff]
    %v62 = vld [vmem:[#allocation4 + $0xe8] sm:$0xff]
    %v63 = vld [vmem:[#allocation4 + $0xf0] sm:$0xff]
    %v64 = vld [vmem:[#allocation4 + $0xf8] sm:$0xff]
    %v65 = vld [vmem:[#allocation4 + $0x100] sm:$0xff]
    %v66 = vld [vmem:[#allocation4 + $0x108] sm:$0xff]
    %v67 = vld [vmem:[#allocation4 + $0x110] sm:$0xff]
    %v68 = vld [vmem:[#allocation4 + $0x118] sm:$0xff]
    %v69 = vld [vmem:[#allocation4 + $0x120] sm:$0xff]
    %v70 = vld [vmem:[#allocation4 + $0x128] sm:$0xff]
    %v71 = vld [vmem:[#allocation4 + $0x130] sm:$0xff]
    %v72 = vld [vmem:[#allocation4 + $0x138] sm:$0xff]
    %v73 = vld [vmem:[#allocation4 + $0x140] sm:$0xff]
    %v74 = vld [vmem:[#allocation4 + $0x148] sm:$0xff]
    %v75 = vld [vmem:[#allocation4 + $0x150] sm:$0xff]
    %v76 = vld [vmem:[#allocation4 + $0x158] sm:$0xff]
    %v77 = vld [vmem:[#allocation4 + $0x160] sm:$0xff]
    %v78 = vld [vmem:[#allocation4 + $0x168] sm:$0xff]
    %v79 = vld [vmem:[#allocation4 + $0x170] sm:$0xff]
    %v80 = vld [vmem:[#allocation4 + $0x178] sm:$0xff]
    %v81 = vld [vmem:[#allocation4 + $0x180] sm:$0xff]
    %v82 = vld [vmem:[#allocation4 + $0x188] sm:$0xff]
    %v83 = vld [vmem:[#allocation4 + $0x190] sm:$0xff]
    %v84 = vld [vmem:[#allocation4 + $0x198] sm:$0xff]
    %v85 = vld [vmem:[#allocation4 + $0x1a0] sm:$0xff]
    %v86 = vld [vmem:[#allocation4 + $0x1a8] sm:$0xff]
    %v87 = vld [vmem:[#allocation4 + $0x1b0] sm:$0xff]
    %v88 = vld [vmem:[#allocation4 + $0x1b8] sm:$0xff]
    %v89 = vld [vmem:[#allocation4 + $0x1c0] sm:$0xff]
    %v90 = vld [vmem:[#allocation4 + $0x1c8] sm:$0xff]
    %v91 = vld [vmem:[#allocation4 + $0x1d0] sm:$0xff]
    %v92 = vld [vmem:[#allocation4 + $0x1d8] sm:$0xff]
    %v93 = vld [vmem:[#allocation4 + $0x1e0] sm:$0xff]
    %v94 = vld [vmem:[#allocation4 + $0x1e8] sm:$0xff]
    %v95 = vld [vmem:[#allocation4 + $0x1f0] sm:$0xff]
    %v96 = vld [vmem:[#allocation4 + $0x1f8] sm:$0xff]
    %v97 = vld [vmem:[#allocation4 + $0x200] sm:$0xff]
    %v98 = vld [vmem:[#allocation4 + $0x208] sm:$0xff]
    %v99 = vld [vmem:[#allocation4 + $0x210] sm:$0xff]
    %v100 = vld [vmem:[#allocation4 + $0x218] sm:$0xff]
    %v101 = vld [vmem:[#allocation4 + $0x220] sm:$0xff]
    %v102 = vld [vmem:[#allocation4 + $0x228] sm:$0xff]
    %v103 = vld [vmem:[#allocation4 + $0x230] sm:$0xff]
    %v104 = vld [vmem:[#allocation4 + $0x238] sm:$0xff]
    %v105 = vld [vmem:[#allocation4 + $0x240] sm:$0xff]
    %v106 = vld [vmem:[#allocation4 + $0x248] sm:$0xff]
    %v107 = vld [vmem:[#allocation4 + $0x250] sm:$0xff]
    %v108 = vld [vmem:[#allocation4 + $0x258] sm:$0xff]
    %v109 = vld [vmem:[#allocation4 + $0x260] sm:$0xff]
    %v110 = vld [vmem:[#allocation4 + $0x268] sm:$0xff]
    %v111 = vld [vmem:[#allocation4 + $0x270] sm:$0xff]
    %v112 = vld [vmem:[#allocation4 + $0x278] sm:$0xff]
    %v113 = vld [vmem:[#allocation4 + $0x280] sm:$0xff]
    %v114 = vld [vmem:[#allocation4 + $0x288] sm:$0xff]
    %v115 = vld [vmem:[#allocation4 + $0x290] sm:$0xff]
    %v116 = vld [vmem:[#allocation4 + $0x298] sm:$0xff]
    %v117 = vld [vmem:[#allocation4 + $0x2a0] sm:$0xff]
    %v118 = vld [vmem:[#allocation4 + $0x2a8] sm:$0xff]
    %v119 = vld [vmem:[#allocation4 + $0x2b0] sm:$0xff]
    %v120 = vld [vmem:[#allocation4 + $0x2b8] sm:$0xff]
    %v121 = vld [vmem:[#allocation4 + $0x2c0] sm:$0xff]
    %v122 = vld [vmem:[#allocation4 + $0x2c8] sm:$0xff]
    %v123 = vld [vmem:[#allocation4 + $0x2d0] sm:$0xff]
    %v124 = vld [vmem:[#allocation4 + $0x2d8] sm:$0xff]
    %v125 = vld [vmem:[#allocation4 + $0x2e0] sm:$0xff]
    %v126 = vld [vmem:[#allocation4 + $0x2e8] sm:$0xff]
    %v127 = vld [vmem:[#allocation4 + $0x2f0] sm:$0xff]
    %v128 = vld [vmem:[#allocation4 + $0x2f8] sm:$0xff]
    %v129 = vld [vmem:[#allocation4 + $0x300] sm:$0xff]
    %v130 = vld [vmem:[#allocation4 + $0x308] sm:$0xff]
    %v131 = vld [vmem:[#allocation4 + $0x310] sm:$0xff]
    %v132 = vld [vmem:[#allocation4 + $0x318] sm:$0xff]
    %v133 = vld [vmem:[#allocation4 + $0x320] sm:$0xff]
    %v134 = vld [vmem:[#allocation4 + $0x328] sm:$0xff]
    %v135 = vld [vmem:[#allocation4 + $0x330] sm:$0xff]
    %v136 = vld [vmem:[#allocation4 + $0x338] sm:$0xff]
    %v137 = vld [vmem:[#allocation4 + $0x340] sm:$0xff]
    %v138 = vld [vmem:[#allocation4 + $0x348] sm:$0xff]
    %v139 = vld [vmem:[#allocation4 + $0x350] sm:$0xff]
    %v140 = vld [vmem:[#allocation4 + $0x358] sm:$0xff]
    %v141 = vld [vmem:[#allocation4 + $0x360] sm:$0xff]
    %v142 = vld [vmem:[#allocation4 + $0x368] sm:$0xff]
    %v143 = vld [vmem:[#allocation4 + $0x370] sm:$0xff]
    %v144 = vld [vmem:[#allocation4 + $0x378] sm:$0xff]
    %v145 = vld [vmem:[#allocation4 + $0x380] sm:$0xff]
    %v146 = vld [vmem:[#allocation4 + $0x388] sm:$0xff]
    %v147 = vld [vmem:[#allocation4 + $0x390] sm:$0xff]
    %v148 = vld [vmem:[#allocation4 + $0x398] sm:$0xff]
    %v149 = vld [vmem:[#allocation4 + $0x3a0] sm:$0xff]
    %v150 = vld [vmem:[#allocation4 + $0x3a8] sm:$0xff]
    %v151 = vld [vmem:[#allocation4 + $0x3b0] sm:$0xff]
    %v152 = vld [vmem:[#allocation4 + $0x3b8] sm:$0xff]
    %v153 = vld [vmem:[#allocation4 + $0x3c0] sm:$0xff]
    %v154 = vld [vmem:[#allocation4 + $0x3c8] sm:$0xff]
    %v155 = vld [vmem:[#allocation4 + $0x3d0] sm:$0xff]
    %v156 = vld [vmem:[#allocation4 + $0x3d8] sm:$0xff]
    %v157 = vld [vmem:[#allocation4 + $0x3e0] sm:$0xff]
    %v158 = vld [vmem:[#allocation4 + $0x3e8] sm:$0xff]
    %v159 = vld [vmem:[#allocation4 + $0x3f0] sm:$0xff]
    %v160 = vld [vmem:[#allocation4 + $0x3f8] sm:$0xff]
    %v161 = vld [vmem:[#allocation4 + $0x400] sm:$0xff]
    %v162 = vld [vmem:[#allocation4 + $0x408] sm:$0xff]
    %v163 = vld [vmem:[#allocation4 + $0x410] sm:$0xff]
    %v164 = vld [vmem:[#allocation4 + $0x418] sm:$0xff]
    %v165 = vld [vmem:[#allocation4 + $0x420] sm:$0xff]
    %v166 = vld [vmem:[#allocation4 + $0x428] sm:$0xff]
    %v167 = vld [vmem:[#allocation4 + $0x430] sm:$0xff]
    %v168 = vld [vmem:[#allocation4 + $0x438] sm:$0xff]
    %v169 = vld [vmem:[#allocation4 + $0x440] sm:$0xff]
    %v170 = vld [vmem:[#allocation4 + $0x448] sm:$0xff]
    %v171 = vld [vmem:[#allocation4 + $0x450] sm:$0xff]
    %v172 = vld [vmem:[#allocation4 + $0x458] sm:$0xff]
    %v173 = vld [vmem:[#allocation4 + $0x460] sm:$0xff]
    %v174 = vld [vmem:[#allocation4 + $0x468] sm:$0xff]
    %v175 = vld [vmem:[#allocation4 + $0x470] sm:$0xff]
    %v176 = vld [vmem:[#allocation4 + $0x478] sm:$0xff]
    %v177 = vld [vmem:[#allocation4 + $0x480] sm:$0xff]
    %v178 = vld [vmem:[#allocation4 + $0x488] sm:$0xff]
    %v179 = vld [vmem:[#allocation4 + $0x490] sm:$0xff]
    %v180 = vld [vmem:[#allocation4 + $0x498] sm:$0xff]
    %v181 = vld [vmem:[#allocation4 + $0x4a0] sm:$0xff]
    %v182 = vld [vmem:[#allocation4 + $0x4a8] sm:$0xff]
    %v183 = vld [vmem:[#allocation4 + $0x4b0] sm:$0xff]
    %v184 = vld [vmem:[#allocation4 + $0x4b8] sm:$0xff]
    %v185 = vld [vmem:[#allocation4 + $0x4c0] sm:$0xff]
    %v186 = vld [vmem:[#allocation4 + $0x4c8] sm:$0xff]
    %v187 = vld [vmem:[#allocation4 + $0x4d0] sm:$0xff]
    %v188 = vld [vmem:[#allocation4 + $0x4d8] sm:$0xff]
    %v189 = vld [vmem:[#allocation4 + $0x4e0] sm:$0xff]
    %v190 = vld [vmem:[#allocation4 + $0x4e8] sm:$0xff]
    %v191 = vld [vmem:[#allocation4 + $0x4f0] sm:$0xff]
    %v192 = vld [vmem:[#allocation4 + $0x4f8] sm:$0xff]
    %v193 = vld [vmem:[#allocation4 + $0x500] sm:$0xff]
    %v194 = vld [vmem:[#allocation4 + $0x508] sm:$0xff]
    %v195 = vld [vmem:[#allocation4 + $0x510] sm:$0xff]
    %v196 = vld [vmem:[#allocation4 + $0x518] sm:$0xff]
    %v197 = vld [vmem:[#allocation4 + $0x520] sm:$0xff]
    %v198 = vld [vmem:[#allocation4 + $0x528] sm:$0xff]
    %v199 = vld [vmem:[#allocation4 + $0x530] sm:$0xff]
    %v200 = vld [vmem:[#allocation4 + $0x538] sm:$0xff]
    %v201 = vld [vmem:[#allocation4 + $0x540] sm:$0xff]
    %v202 = vld [vmem:[#allocation4 + $0x548] sm:$0xff]
    %v203 = vld [vmem:[#allocation4 + $0x550] sm:$0xff]
    %v204 = vld [vmem:[#allocation4 + $0x558] sm:$0xff]
    %v205 = vld [vmem:[#allocation4 + $0x560] sm:$0xff]
    %v206 = vld [vmem:[#allocation4 + $0x568] sm:$0xff]
    %v207 = vld [vmem:[#allocation4 + $0x570] sm:$0xff]
    %v208 = vld [vmem:[#allocation4 + $0x578] sm:$0xff]
    %v209 = vld [vmem:[#allocation4 + $0x580] sm:$0xff]
    %v210 = vld [vmem:[#allocation4 + $0x588] sm:$0xff]
    %v211 = vld [vmem:[#allocation4 + $0x590] sm:$0xff]
    %v212 = vld [vmem:[#allocation4 + $0x598] sm:$0xff]
    %v213 = vld [vmem:[#allocation4 + $0x5a0] sm:$0xff]
    %v214 = vld [vmem:[#allocation4 + $0x5a8] sm:$0xff]
    %v215 = vld [vmem:[#allocation4 + $0x5b0] sm:$0xff]
    %v216 = vld [vmem:[#allocation4 + $0x5b8] sm:$0xff]
    %v217 = vld [vmem:[#allocation4 + $0x5c0] sm:$0xff]
    %v218 = vld [vmem:[#allocation4 + $0x5c8] sm:$0xff]
    %v219 = vld [vmem:[#allocation4 + $0x5d0] sm:$0xff]
    %v220 = vld [vmem:[#allocation4 + $0x5d8] sm:$0xff]
    %v221 = vld [vmem:[#allocation4 + $0x5e0] sm:$0xff]
    %v222 = vld [vmem:[#allocation4 + $0x5e8] sm:$0xff]
    %v223 = vld [vmem:[#allocation4 + $0x5f0] sm:$0xff]
    %v224 = vld [vmem:[#allocation4 + $0x5f8] sm:$0xff]
    %v225 = vld [vmem:[#allocation4 + $0x600] sm:$0xff]
    %v226 = vld [vmem:[#allocation4 + $0x608] sm:$0xff]
    %v227 = vld [vmem:[#allocation4 + $0x610] sm:$0xff]
    %v228 = vld [vmem:[#allocation4 + $0x618] sm:$0xff]
    %v229 = vld [vmem:[#allocation4 + $0x620] sm:$0xff]
    %v230 = vld [vmem:[#allocation4 + $0x628] sm:$0xff]
    %v231 = vld [vmem:[#allocation4 + $0x630] sm:$0xff]
    %v232 = vld [vmem:[#allocation4 + $0x638] sm:$0xff]
    %v233 = vld [vmem:[#allocation4 + $0x640] sm:$0xff]
    %v234 = vld [vmem:[#allocation4 + $0x648] sm:$0xff]
    %v235 = vld [vmem:[#allocation4 + $0x650] sm:$0xff]
    %v236 = vld [vmem:[#allocation4 + $0x658] sm:$0xff]
    %v237 = vld [vmem:[#allocation4 + $0x660] sm:$0xff]
    %v238 = vld [vmem:[#allocation4 + $0x668] sm:$0xff]
    %v239 = vld [vmem:[#allocation4 + $0x670] sm:$0xff]
    %v240 = vld [vmem:[#allocation4 + $0x678] sm:$0xff]
    %v241 = vld [vmem:[#allocation4 + $0x680] sm:$0xff]
    %v242 = vld [vmem:[#allocation4 + $0x688] sm:$0xff]
    %v243 = vld [vmem:[#allocation4 + $0x690] sm:$0xff]
    %v244 = vld [vmem:[#allocation4 + $0x698] sm:$0xff]
    %v245 = vld [vmem:[#allocation4 + $0x6a0] sm:$0xff]
    %v246 = vld [vmem:[#allocation4 + $0x6a8] sm:$0xff]
    %v247 = vld [vmem:[#allocation4 + $0x6b0] sm:$0xff]
    %v248 = vld [vmem:[#allocation4 + $0x6b8] sm:$0xff]
    %v249 = vld [vmem:[#allocation4 + $0x6c0] sm:$0xff]
    %v250 = vld [vmem:[#allocation4 + $0x6c8] sm:$0xff]
    %v251 = vld [vmem:[#allocation4 + $0x6d0] sm:$0xff]
    %v252 = vld [vmem:[#allocation4 + $0x6d8] sm:$0xff]
    %v253 = vld [vmem:[#allocation4 + $0x6e0] sm:$0xff]
    %v254 = vld [vmem:[#allocation4 + $0x6e8] sm:$0xff]
    %v255 = vld [vmem:[#allocation4 + $0x6f0] sm:$0xff]
    %v256 = vld [vmem:[#allocation4 + $0x6f8] sm:$0xff]
    %v257 = vld [vmem:[#allocation4 + $0x700] sm:$0xff]
    %v258 = vld [vmem:[#allocation4 + $0x708] sm:$0xff]
    %v259 = vld [vmem:[#allocation4 + $0x710] sm:$0xff]
    %v260 = vld [vmem:[#allocation4 + $0x718] sm:$0xff]
    %v261 = vld [vmem:[#allocation4 + $0x720] sm:$0xff]
    %v262 = vld [vmem:[#allocation4 + $0x728] sm:$0xff]
    %v263 = vld [vmem:[#allocation4 + $0x730] sm:$0xff]
    %v264 = vld [vmem:[#allocation4 + $0x738] sm:$0xff]
    %v265 = vld [vmem:[#allocation4 + $0x740] sm:$0xff]
    %v266 = vld [vmem:[#allocation4 + $0x748] sm:$0xff]
    %v267 = vld [vmem:[#allocation4 + $0x750] sm:$0xff]
    %v268 = vld [vmem:[#allocation4 + $0x758] sm:$0xff]
    %v269 = vld [vmem:[#allocation4 + $0x760] sm:$0xff]
    %v270 = vld [vmem:[#allocation4 + $0x768] sm:$0xff]
    %v271 = vld [vmem:[#allocation4 + $0x770] sm:$0xff]
    %v272 = vld [vmem:[#allocation4 + $0x778] sm:$0xff]
    %v273 = vld [vmem:[#allocation4 + $0x780] sm:$0xff]
    %v274 = vld [vmem:[#allocation4 + $0x788] sm:$0xff]
    %v275 = vld [vmem:[#allocation4 + $0x790] sm:$0xff]
    %v276 = vld [vmem:[#allocation4 + $0x798] sm:$0xff]
    %v277 = vld [vmem:[#allocation4 + $0x7a0] sm:$0xff]
    %v278 = vld [vmem:[#allocation4 + $0x7a8] sm:$0xff]
    %v279 = vld [vmem:[#allocation4 + $0x7b0] sm:$0xff]
    %v280 = vld [vmem:[#allocation4 + $0x7b8] sm:$0xff]
    %v281 = vld [vmem:[#allocation4 + $0x7c0] sm:$0xff]
    %v282 = vld [vmem:[#allocation4 + $0x7c8] sm:$0xff]
    %v283 = vld [vmem:[#allocation4 + $0x7d0] sm:$0xff]
    %v284 = vld [vmem:[#allocation4 + $0x7d8] sm:$0xff]
    %v285 = vld [vmem:[#allocation4 + $0x7e0] sm:$0xff]
    %v286 = vld [vmem:[#allocation4 + $0x7e8] sm:$0xff]
    %v287 = vld [vmem:[#allocation4 + $0x7f0] sm:$0xff]
    %v288 = vld [vmem:[#allocation4 + $0x7f8] sm:$0xff]
    %v289 = vstv %s31
    %v290 = vmul.f32 %v289, %v33
    %v291 = vmul.f32 %v289, %v34
    %v292 = vmul.f32 %v289, %v35
    %v293 = vmul.f32 %v289, %v36
    %v294 = vmul.f32 %v289, %v37
    %v295 = vmul.f32 %v289, %v38
    %v296 = vmul.f32 %v289, %v39
    %v297 = vmul.f32 %v289, %v40
    %v298 = vmul.f32 %v289, %v41
    %v299 = vmul.f32 %v289, %v42
    %v300 = vmul.f32 %v289, %v43
    %v301 = vmul.f32 %v289, %v44
    %v302 = vmul.f32 %v289, %v45
    %v303 = vmul.f32 %v289, %v46
    %v304 = vmul.f32 %v289, %v47
    %v305 = vmul.f32 %v289, %v48
    %v306 = vmul.f32 %v289, %v49
    %v307 = vmul.f32 %v289, %v50
    %v308 = vmul.f32 %v289, %v51
    %v309 = vmul.f32 %v289, %v52
    %v310 = vmul.f32 %v289, %v53
    %v311 = vmul.f32 %v289, %v54
    %v312 = vmul.f32 %v289, %v55
    %v313 = vmul.f32 %v289, %v56
    %v314 = vmul.f32 %v289, %v57
    %v315 = vmul.f32 %v289, %v58
    %v316 = vmul.f32 %v289, %v59
    %v317 = vmul.f32 %v289, %v60
    %v318 = vmul.f32 %v289, %v61
    %v319 = vmul.f32 %v289, %v62
    %v320 = vmul.f32 %v289, %v63
    %v321 = vmul.f32 %v289, %v64
    %v322 = vmul.f32 %v289, %v65
    %v323 = vmul.f32 %v289, %v66
    %v324 = vmul.f32 %v289, %v67
    %v325 = vmul.f32 %v289, %v68
    %v326 = vmul.f32 %v289, %v69
    %v327 = vmul.f32 %v289, %v70
    %v328 = vmul.f32 %v289, %v71
    %v329 = vmul.f32 %v289, %v72
    %v330 = vmul.f32 %v289, %v73
    %v331 = vmul.f32 %v289, %v74
    %v332 = vmul.f32 %v289, %v75
    %v333 = vmul.f32 %v289, %v76
    %v334 = vmul.f32 %v289, %v77
    %v335 = vmul.f32 %v289, %v78
    %v336 = vmul.f32 %v289, %v79
    %v337 = vmul.f32 %v289, %v80
    %v338 = vmul.f32 %v289, %v81
    %v339 = vmul.f32 %v289, %v82
    %v340 = vmul.f32 %v289, %v83
    %v341 = vmul.f32 %v289, %v84
    %v342 = vmul.f32 %v289, %v85
    %v343 = vmul.f32 %v289, %v86
    %v344 = vmul.f32 %v289, %v87
    %v345 = vmul.f32 %v289, %v88
    %v346 = vmul.f32 %v289, %v89
    %v347 = vmul.f32 %v289, %v90
    %v348 = vmul.f32 %v289, %v91
    %v349 = vmul.f32 %v289, %v92
    %v350 = vmul.f32 %v289, %v93
    %v351 = vmul.f32 %v289, %v94
    %v352 = vmul.f32 %v289, %v95
    %v353 = vmul.f32 %v289, %v96
    %v354 = vmul.f32 %v289, %v97
    %v355 = vmul.f32 %v289, %v98
    %v356 = vmul.f32 %v289, %v99
    %v357 = vmul.f32 %v289, %v100
    %v358 = vmul.f32 %v289, %v101
    %v359 = vmul.f32 %v289, %v102
    %v360 = vmul.f32 %v289, %v103
    %v361 = vmul.f32 %v289, %v104
    %v362 = vmul.f32 %v289, %v105
    %v363 = vmul.f32 %v289, %v106
    %v364 = vmul.f32 %v289, %v107
    %v365 = vmul.f32 %v289, %v108
    %v366 = vmul.f32 %v289, %v109
    %v367 = vmul.f32 %v289, %v110
    %v368 = vmul.f32 %v289, %v111
    %v369 = vmul.f32 %v289, %v112
    %v370 = vmul.f32 %v289, %v113
    %v371 = vmul.f32 %v289, %v114
    %v372 = vmul.f32 %v289, %v115
    %v373 = vmul.f32 %v289, %v116
    %v374 = vmul.f32 %v289, %v117
    %v375 = vmul.f32 %v289, %v118
    %v376 = vmul.f32 %v289, %v119
    %v377 = vmul.f32 %v289, %v120
    %v378 = vmul.f32 %v289, %v121
    %v379 = vmul.f32 %v289, %v122
    %v380 = vmul.f32 %v289, %v123
    %v381 = vmul.f32 %v289, %v124
    %v382 = vmul.f32 %v289, %v125
    %v383 = vmul.f32 %v289, %v126
    %v384 = vmul.f32 %v289, %v127
    %v385 = vmul.f32 %v289, %v128
    %v386 = vmul.f32 %v289, %v129
    %v387 = vmul.f32 %v289, %v130
    %v388 = vmul.f32 %v289, %v131
    %v389 = vmul.f32 %v289, %v132
    %v390 = vmul.f32 %v289, %v133
    %v391 = vmul.f32 %v289, %v134
    %v392 = vmul.f32 %v289, %v135
    %v393 = vmul.f32 %v289, %v136
    %v394 = vmul.f32 %v289, %v137
    %v395 = vmul.f32 %v289, %v138
    %v396 = vmul.f32 %v289, %v139
    %v397 = vmul.f32 %v289, %v140
    %v398 = vmul.f32 %v289, %v141
    %v399 = vmul.f32 %v289, %v142
    %v400 = vmul.f32 %v289, %v143
    %v401 = vmul.f32 %v289, %v144
    %v402 = vmul.f32 %v289, %v145
    %v403 = vmul.f32 %v289, %v146
    %v404 = vmul.f32 %v289, %v147
    %v405 = vmul.f32 %v289, %v148
    %v406 = vmul.f32 %v289, %v149
    %v407 = vmul.f32 %v289, %v150
    %v408 = vmul.f32 %v289, %v151
    %v409 = vmul.f32 %v289, %v152
    %v410 = vmul.f32 %v289, %v153
    %v411 = vmul.f32 %v289, %v154
    %v412 = vmul.f32 %v289, %v155
    %v413 = vmul.f32 %v289, %v156
    %v414 = vmul.f32 %v289, %v157
    %v415 = vmul.f32 %v289, %v158
    %v416 = vmul.f32 %v289, %v159
    %v417 = vmul.f32 %v289, %v160
    %v418 = vmul.f32 %v289, %v161
    %v419 = vmul.f32 %v289, %v162
    %v420 = vmul.f32 %v289, %v163
    %v421 = vmul.f32 %v289, %v164
    %v422 = vmul.f32 %v289, %v165
    %v423 = vmul.f32 %v289, %v166
    %v424 = vmul.f32 %v289, %v167
    %v425 = vmul.f32 %v289, %v168
    %v426 = vmul.f32 %v289, %v169
    %v427 = vmul.f32 %v289, %v170
    %v428 = vmul.f32 %v289, %v171
    %v429 = vmul.f32 %v289, %v172
    %v430 = vmul.f32 %v289, %v173
    %v431 = vmul.f32 %v289, %v174
    %v432 = vmul.f32 %v289, %v175
    %v433 = vmul.f32 %v289, %v176
    %v434 = vmul.f32 %v289, %v177
    %v435 = vmul.f32 %v289, %v178
    %v436 = vmul.f32 %v289, %v179
    %v437 = vmul.f32 %v289, %v180
    %v438 = vmul.f32 %v289, %v181
    %v439 = vmul.f32 %v289, %v182
    %v440 = vmul.f32 %v289, %v183
    %v441 = vmul.f32 %v289, %v184
    %v442 = vmul.f32 %v289, %v185
    %v443 = vmul.f32 %v289, %v186
    %v444 = vmul.f32 %v289, %v187
    %v445 = vmul.f32 %v289, %v188
    %v446 = vmul.f32 %v289, %v189
    %v447 = vmul.f32 %v289, %v190
    %v448 = vmul.f32 %v289, %v191
    %v449 = vmul.f32 %v289, %v192
    %v450 = vmul.f32 %v289, %v193
    %v451 = vmul.f32 %v289, %v194
    %v452 = vmul.f32 %v289, %v195
    %v453 = vmul.f32 %v289, %v196
    %v454 = vmul.f32 %v289, %v197
    %v455 = vmul.f32 %v289, %v198
    %v456 = vmul.f32 %v289, %v199
    %v457 = vmul.f32 %v289, %v200
    %v458 = vmul.f32 %v289, %v201
    %v459 = vmul.f32 %v289, %v202
    %v460 = vmul.f32 %v289, %v203
    %v461 = vmul.f32 %v289, %v204
    %v462 = vmul.f32 %v289, %v205
    %v463 = vmul.f32 %v289, %v206
    %v464 = vmul.f32 %v289, %v207
    %v465 = vmul.f32 %v289, %v208
    %v466 = vmul.f32 %v289, %v209
    %v467 = vmul.f32 %v289, %v210
    %v468 = vmul.f32 %v289, %v211
    %v469 = vmul.f32 %v289, %v212
    %v470 = vmul.f32 %v289, %v213
    %v471 = vmul.f32 %v289, %v214
    %v472 = vmul.f32 %v289, %v215
    %v473 = vmul.f32 %v289, %v216
    %v474 = vmul.f32 %v289, %v217
    %v475 = vmul.f32 %v289, %v218
    %v476 = vmul.f32 %v289, %v219
    %v477 = vmul.f32 %v289, %v220
    %v478 = vmul.f32 %v289, %v221
    %v479 = vmul.f32 %v289, %v222
    %v480 = vmul.f32 %v289, %v223
    %v481 = vmul.f32 %v289, %v224
    %v482 = vmul.f32 %v289, %v225
    %v483 = vmul.f32 %v289, %v226
    %v484 = vmul.f32 %v289, %v227
    %v485 = vmul.f32 %v289, %v228
    %v486 = vmul.f32 %v289, %v229
    %v487 = vmul.f32 %v289, %v230
    %v488 = vmul.f32 %v289, %v231
    %v489 = vmul.f32 %v289, %v232
    %v490 = vmul.f32 %v289, %v233
    %v491 = vmul.f32 %v289, %v234
    %v492 = vmul.f32 %v289, %v235
    %v493 = vmul.f32 %v289, %v236
    %v494 = vmul.f32 %v289, %v237
    %v495 = vmul.f32 %v289, %v238
    %v496 = vmul.f32 %v289, %v239
    %v497 = vmul.f32 %v289, %v240
    %v498 = vmul.f32 %v289, %v241
    %v499 = vmul.f32 %v289, %v242
    %v500 = vmul.f32 %v289, %v243
    %v501 = vmul.f32 %v289, %v244
    %v502 = vmul.f32 %v289, %v245
    %v503 = vmul.f32 %v289, %v246
    %v504 = vmul.f32 %v289, %v247
    %v505 = vmul.f32 %v289, %v248
    %v506 = vmul.f32 %v289, %v249
    %v507 = vmul.f32 %v289, %v250
    %v508 = vmul.f32 %v289, %v251
    %v509 = vmul.f32 %v289, %v252
    %v510 = vmul.f32 %v289, %v253
    %v511 = vmul.f32 %v289, %v254
    %v512 = vmul.f32 %v289, %v255
    %v513 = vmul.f32 %v289, %v256
    %v514 = vmul.f32 %v289, %v257
    %v515 = vmul.f32 %v289, %v258
    %v516 = vmul.f32 %v289, %v259
    %v517 = vmul.f32 %v289, %v260
    %v518 = vmul.f32 %v289, %v261
    %v519 = vmul.f32 %v289, %v262
    %v520 = vmul.f32 %v289, %v263
    %v521 = vmul.f32 %v289, %v264
    %v522 = vmul.f32 %v289, %v265
    %v523 = vmul.f32 %v289, %v266
    %v524 = vmul.f32 %v289, %v267
    %v525 = vmul.f32 %v289, %v268
    %v526 = vmul.f32 %v289, %v269
    %v527 = vmul.f32 %v289, %v270
    %v528 = vmul.f32 %v289, %v271
    %v529 = vmul.f32 %v289, %v272
    %v530 = vmul.f32 %v289, %v273
    %v531 = vmul.f32 %v289, %v274
    %v532 = vmul.f32 %v289, %v275
    %v533 = vmul.f32 %v289, %v276
    %v534 = vmul.f32 %v289, %v277
    %v535 = vmul.f32 %v289, %v278
    %v536 = vmul.f32 %v289, %v279
    %v537 = vmul.f32 %v289, %v280
    %v538 = vmul.f32 %v289, %v281
    %v539 = vmul.f32 %v289, %v282
    %v540 = vmul.f32 %v289, %v283
    %v541 = vmul.f32 %v289, %v284
    %v542 = vmul.f32 %v289, %v285
    %v543 = vmul.f32 %v289, %v286
    %v544 = vmul.f32 %v289, %v287
    %v545 = vmul.f32 %v289, %v288
    %v546 = vstv %s32
    %v547 = vadd.f32 %v290, %v546
    %v548 = vadd.f32 %v291, %v546
    %v549 = vadd.f32 %v292, %v546
    %v550 = vadd.f32 %v293, %v546
    %v551 = vadd.f32 %v294, %v546
    %v552 = vadd.f32 %v295, %v546
    %v553 = vadd.f32 %v296, %v546
    %v554 = vadd.f32 %v297, %v546
    %v555 = vadd.f32 %v298, %v546
    %v556 = vadd.f32 %v299, %v546
    %v557 = vadd.f32 %v300, %v546
    %v558 = vadd.f32 %v301, %v546
    %v559 = vadd.f32 %v302, %v546
    %v560 = vadd.f32 %v303, %v546
    %v561 = vadd.f32 %v304, %v546
    %v562 = vadd.f32 %v305, %v546
    %v563 = vadd.f32 %v306, %v546
    %v564 = vadd.f32 %v307, %v546
    %v565 = vadd.f32 %v308, %v546
    %v566 = vadd.f32 %v309, %v546
    %v567 = vadd.f32 %v310, %v546
    %v568 = vadd.f32 %v311, %v546
    %v569 = vadd.f32 %v312, %v546
    %v570 = vadd.f32 %v313, %v546
    %v571 = vadd.f32 %v314, %v546
    %v572 = vadd.f32 %v315, %v546
    %v573 = vadd.f32 %v316, %v546
    %v574 = vadd.f32 %v317, %v546
    %v575 = vadd.f32 %v318, %v546
    %v576 = vadd.f32 %v319, %v546
    %v577 = vadd.f32 %v320, %v546
    %v578 = vadd.f32 %v321, %v546
    %v579 = vadd.f32 %v322, %v546
    %v580 = vadd.f32 %v323, %v546
    %v581 = vadd.f32 %v324, %v546
    %v582 = vadd.f32 %v325, %v546
    %v583 = vadd.f32 %v326, %v546
    %v584 = vadd.f32 %v327, %v546
    %v585 = vadd.f32 %v328, %v546
    %v586 = vadd.f32 %v329, %v546
    %v587 = vadd.f32 %v330, %v546
    %v588 = vadd.f32 %v331, %v546
    %v589 = vadd.f32 %v332, %v546
    %v590 = vadd.f32 %v333, %v546
    %v591 = vadd.f32 %v334, %v546
    %v592 = vadd.f32 %v335, %v546
    %v593 = vadd.f32 %v336, %v546
    %v594 = vadd.f32 %v337, %v546
    %v595 = vadd.f32 %v338, %v546
    %v596 = vadd.f32 %v339, %v546
    %v597 = vadd.f32 %v340, %v546
    %v598 = vadd.f32 %v341, %v546
    %v599 = vadd.f32 %v342, %v546
    %v600 = vadd.f32 %v343, %v546
    %v601 = vadd.f32 %v344, %v546
    %v602 = vadd.f32 %v345, %v546
    %v603 = vadd.f32 %v346, %v546
    %v604 = vadd.f32 %v347, %v546
    %v605 = vadd.f32 %v348, %v546
    %v606 = vadd.f32 %v349, %v546
    %v607 = vadd.f32 %v350, %v546
    %v608 = vadd.f32 %v351, %v546
    %v609 = vadd.f32 %v352, %v546
    %v610 = vadd.f32 %v353, %v546
    %v611 = vadd.f32 %v354, %v546
    %v612 = vadd.f32 %v355, %v546
    %v613 = vadd.f32 %v356, %v546
    %v614 = vadd.f32 %v357, %v546
    %v615 = vadd.f32 %v358, %v546
    %v616 = vadd.f32 %v359, %v546
    %v617 = vadd.f32 %v360, %v546
    %v618 = vadd.f32 %v361, %v546
    %v619 = vadd.f32 %v362, %v546
    %v620 = vadd.f32 %v363, %v546
    %v621 = vadd.f32 %v364, %v546
    %v622 = vadd.f32 %v365, %v546
    %v623 = vadd.f32 %v366, %v546
    %v624 = vadd.f32 %v367, %v546
    %v625 = vadd.f32 %v368, %v546
    %v626 = vadd.f32 %v369, %v546
    %v627 = vadd.f32 %v370, %v546
    %v628 = vadd.f32 %v371, %v546
    %v629 = vadd.f32 %v372, %v546
    %v630 = vadd.f32 %v373, %v546
    %v631 = vadd.f32 %v374, %v546
    %v632 = vadd.f32 %v375, %v546
    %v633 = vadd.f32 %v376, %v546
    %v634 = vadd.f32 %v377, %v546
    %v635 = vadd.f32 %v378, %v546
    %v636 = vadd.f32 %v379, %v546
    %v637 = vadd.f32 %v380, %v546
    %v638 = vadd.f32 %v381, %v546
    %v639 = vadd.f32 %v382, %v546
    %v640 = vadd.f32 %v383, %v546
    %v641 = vadd.f32 %v384, %v546
    %v642 = vadd.f32 %v385, %v546
    %v643 = vadd.f32 %v386, %v546
    %v644 = vadd.f32 %v387, %v546
    %v645 = vadd.f32 %v388, %v546
    %v646 = vadd.f32 %v389, %v546
    %v647 = vadd.f32 %v390, %v546
    %v648 = vadd.f32 %v391, %v546
    %v649 = vadd.f32 %v392, %v546
    %v650 = vadd.f32 %v393, %v546
    %v651 = vadd.f32 %v394, %v546
    %v652 = vadd.f32 %v395, %v546
    %v653 = vadd.f32 %v396, %v546
    %v654 = vadd.f32 %v397, %v546
    %v655 = vadd.f32 %v398, %v546
    %v656 = vadd.f32 %v399, %v546
    %v657 = vadd.f32 %v400, %v546
    %v658 = vadd.f32 %v401, %v546
    %v659 = vadd.f32 %v402, %v546
    %v660 = vadd.f32 %v403, %v546
    %v661 = vadd.f32 %v404, %v546
    %v662 = vadd.f32 %v405, %v546
    %v663 = vadd.f32 %v406, %v546
    %v664 = vadd.f32 %v407, %v546
    %v665 = vadd.f32 %v408, %v546
    %v666 = vadd.f32 %v409, %v546
    %v667 = vadd.f32 %v410, %v546
    %v668 = vadd.f32 %v411, %v546
    %v669 = vadd.f32 %v412, %v546
    %v670 = vadd.f32 %v413, %v546
    %v671 = vadd.f32 %v414, %v546
    %v672 = vadd.f32 %v415, %v546
    %v673 = vadd.f32 %v416, %v546
    %v674 = vadd.f32 %v417, %v546
    %v675 = vadd.f32 %v418, %v546
    %v676 = vadd.f32 %v419, %v546
    %v677 = vadd.f32 %v420, %v546
    %v678 = vadd.f32 %v421, %v546
    %v679 = vadd.f32 %v422, %v546
    %v680 = vadd.f32 %v423, %v546
    %v681 = vadd.f32 %v424, %v546
    %v682 = vadd.f32 %v425, %v546
    %v683 = vadd.f32 %v426, %v546
    %v684 = vadd.f32 %v427, %v546
    %v685 = vadd.f32 %v428, %v546
    %v686 = vadd.f32 %v429, %v546
    %v687 = vadd.f32 %v430, %v546
    %v688 = vadd.f32 %v431, %v546
    %v689 = vadd.f32 %v432, %v546
    %v690 = vadd.f32 %v433, %v546
    %v691 = vadd.f32 %v434, %v546
    %v692 = vadd.f32 %v435, %v546
    %v693 = vadd.f32 %v436, %v546
    %v694 = vadd.f32 %v437, %v546
    %v695 = vadd.f32 %v438, %v546
    %v696 = vadd.f32 %v439, %v546
    %v697 = vadd.f32 %v440, %v546
    %v698 = vadd.f32 %v441, %v546
    %v699 = vadd.f32 %v442, %v546
    %v700 = vadd.f32 %v443, %v546
    %v701 = vadd.f32 %v444, %v546
    %v702 = vadd.f32 %v445, %v546
    %v703 = vadd.f32 %v446, %v546
    %v704 = vadd.f32 %v447, %v546
    %v705 = vadd.f32 %v448, %v546
    %v706 = vadd.f32 %v449, %v546
    %v707 = vadd.f32 %v450, %v546
    %v708 = vadd.f32 %v451, %v546
    %v709 = vadd.f32 %v452, %v546
    %v710 = vadd.f32 %v453, %v546
    %v711 = vadd.f32 %v454, %v546
    %v712 = vadd.f32 %v455, %v546
    %v713 = vadd.f32 %v456, %v546
    %v714 = vadd.f32 %v457, %v546
    %v715 = vadd.f32 %v458, %v546
    %v716 = vadd.f32 %v459, %v546
    %v717 = vadd.f32 %v460, %v546
    %v718 = vadd.f32 %v461, %v546
    %v719 = vadd.f32 %v462, %v546
    %v720 = vadd.f32 %v463, %v546
    %v721 = vadd.f32 %v464, %v546
    %v722 = vadd.f32 %v465, %v546
    %v723 = vadd.f32 %v466, %v546
    %v724 = vadd.f32 %v467, %v546
    %v725 = vadd.f32 %v468, %v546
    %v726 = vadd.f32 %v469, %v546
    %v727 = vadd.f32 %v470, %v546
    %v728 = vadd.f32 %v471, %v546
    %v729 = vadd.f32 %v472, %v546
    %v730 = vadd.f32 %v473, %v546
    %v731 = vadd.f32 %v474, %v546
    %v732 = vadd.f32 %v475, %v546
    %v733 = vadd.f32 %v476, %v546
    %v734 = vadd.f32 %v477, %v546
    %v735 = vadd.f32 %v478, %v546
    %v736 = vadd.f32 %v479, %v546
    %v737 = vadd.f32 %v480, %v546
    %v738 = vadd.f32 %v481, %v546
    %v739 = vadd.f32 %v482, %v546
    %v740 = vadd.f32 %v483, %v546
    %v741 = vadd.f32 %v484, %v546
    %v742 = vadd.f32 %v485, %v546
    %v743 = vadd.f32 %v486, %v546
    %v744 = vadd.f32 %v487, %v546
    %v745 = vadd.f32 %v488, %v546
    %v746 = vadd.f32 %v489, %v546
    %v747 = vadd.f32 %v490, %v546
    %v748 = vadd.f32 %v491, %v546
    %v749 = vadd.f32 %v492, %v546
    %v750 = vadd.f32 %v493, %v546
    %v751 = vadd.f32 %v494, %v546
    %v752 = vadd.f32 %v495, %v546
    %v753 = vadd.f32 %v496, %v546
    %v754 = vadd.f32 %v497, %v546
    %v755 = vadd.f32 %v498, %v546
    %v756 = vadd.f32 %v499, %v546
    %v757 = vadd.f32 %v500, %v546
    %v758 = vadd.f32 %v501, %v546
    %v759 = vadd.f32 %v502, %v546
    %v760 = vadd.f32 %v503, %v546
    %v761 = vadd.f32 %v504, %v546
    %v762 = vadd.f32 %v505, %v546
    %v763 = vadd.f32 %v506, %v546
    %v764 = vadd.f32 %v507, %v546
    %v765 = vadd.f32 %v508, %v546
    %v766 = vadd.f32 %v509, %v546
    %v767 = vadd.f32 %v510, %v546
    %v768 = vadd.f32 %v511, %v546
    %v769 = vadd.f32 %v512, %v546
    %v770 = vadd.f32 %v513, %v546
    %v771 = vadd.f32 %v514, %v546
    %v772 = vadd.f32 %v515, %v546
    %v773 = vadd.f32 %v516, %v546
    %v774 = vadd.f32 %v517, %v546
    %v775 = vadd.f32 %v518, %v546
    %v776 = vadd.f32 %v519, %v546
    %v777 = vadd.f32 %v520, %v546
    %v778 = vadd.f32 %v521, %v546
    %v779 = vadd.f32 %v522, %v546
    %v780 = vadd.f32 %v523, %v546
    %v781 = vadd.f32 %v524, %v546
    %v782 = vadd.f32 %v525, %v546
    %v783 = vadd.f32 %v526, %v546
    %v784 = vadd.f32 %v527, %v546
    %v785 = vadd.f32 %v528, %v546
    %v786 = vadd.f32 %v529, %v546
    %v787 = vadd.f32 %v530, %v546
    %v788 = vadd.f32 %v531, %v546
    %v789 = vadd.f32 %v532, %v546
    %v790 = vadd.f32 %v533, %v546
    %v791 = vadd.f32 %v534, %v546
    %v792 = vadd.f32 %v535, %v546
    %v793 = vadd.f32 %v536, %v546
    %v794 = vadd.f32 %v537, %v546
    %v795 = vadd.f32 %v538, %v546
    %v796 = vadd.f32 %v539, %v546
    %v797 = vadd.f32 %v540, %v546
    %v798 = vadd.f32 %v541, %v546
    %v799 = vadd.f32 %v542, %v546
    %v800 = vadd.f32 %v543, %v546
    %v801 = vadd.f32 %v544, %v546
    %v802 = vadd.f32 %v545, %v546
    %803 = vst [vmem:[#allocation7] sm:$0xff] %v547
    %804 = vst [vmem:[#allocation7 + $0x8] sm:$0xff] %v548
    %805 = vst [vmem:[#allocation7 + $0x10] sm:$0xff] %v549
    %806 = vst [vmem:[#allocation7 + $0x18] sm:$0xff] %v550
    %807 = vst [vmem:[#allocation7 + $0x20] sm:$0xff] %v551
    %808 = vst [vmem:[#allocation7 + $0x28] sm:$0xff] %v552
    %809 = vst [vmem:[#allocation7 + $0x30] sm:$0xff] %v553
    %810 = vst [vmem:[#allocation7 + $0x38] sm:$0xff] %v554
    %811 = vst [vmem:[#allocation7 + $0x40] sm:$0xff] %v555
    %812 = vst [vmem:[#allocation7 + $0x48] sm:$0xff] %v556
    %813 = vst [vmem:[#allocation7 + $0x50] sm:$0xff] %v557
    %814 = vst [vmem:[#allocation7 + $0x58] sm:$0xff] %v558
    %815 = vst [vmem:[#allocation7 + $0x60] sm:$0xff] %v559
    %816 = vst [vmem:[#allocation7 + $0x68] sm:$0xff] %v560
    %817 = vst [vmem:[#allocation7 + $0x70] sm:$0xff] %v561
    %818 = vst [vmem:[#allocation7 + $0x78] sm:$0xff] %v562
    %819 = vst [vmem:[#allocation7 + $0x80] sm:$0xff] %v563
    %820 = vst [vmem:[#allocation7 + $0x88] sm:$0xff] %v564
    %821 = vst [vmem:[#allocation7 + $0x90] sm:$0xff] %v565
    %822 = vst [vmem:[#allocation7 + $0x98] sm:$0xff] %v566
    %823 = vst [vmem:[#allocation7 + $0xa0] sm:$0xff] %v567
    %824 = vst [vmem:[#allocation7 + $0xa8] sm:$0xff] %v568
    %825 = vst [vmem:[#allocation7 + $0xb0] sm:$0xff] %v569
    %826 = vst [vmem:[#allocation7 + $0xb8] sm:$0xff] %v570
    %827 = vst [vmem:[#allocation7 + $0xc0] sm:$0xff] %v571
    %828 = vst [vmem:[#allocation7 + $0xc8] sm:$0xff] %v572
    %829 = vst [vmem:[#allocation7 + $0xd0] sm:$0xff] %v573
    %830 = vst [vmem:[#allocation7 + $0xd8] sm:$0xff] %v574
    %831 = vst [vmem:[#allocation7 + $0xe0] sm:$0xff] %v575
    %832 = vst [vmem:[#allocation7 + $0xe8] sm:$0xff] %v576
    %833 = vst [vmem:[#allocation7 + $0xf0] sm:$0xff] %v577
    %834 = vst [vmem:[#allocation7 + $0xf8] sm:$0xff] %v578
    %835 = vst [vmem:[#allocation7 + $0x100] sm:$0xff] %v579
    %836 = vst [vmem:[#allocation7 + $0x108] sm:$0xff] %v580
    %837 = vst [vmem:[#allocation7 + $0x110] sm:$0xff] %v581
    %838 = vst [vmem:[#allocation7 + $0x118] sm:$0xff] %v582
    %839 = vst [vmem:[#allocation7 + $0x120] sm:$0xff] %v583
    %840 = vst [vmem:[#allocation7 + $0x128] sm:$0xff] %v584
    %841 = vst [vmem:[#allocation7 + $0x130] sm:$0xff] %v585
    %842 = vst [vmem:[#allocation7 + $0x138] sm:$0xff] %v586
    %843 = vst [vmem:[#allocation7 + $0x140] sm:$0xff] %v587
    %844 = vst [vmem:[#allocation7 + $0x148] sm:$0xff] %v588
    %845 = vst [vmem:[#allocation7 + $0x150] sm:$0xff] %v589
    %846 = vst [vmem:[#allocation7 + $0x158] sm:$0xff] %v590
    %847 = vst [vmem:[#allocation7 + $0x160] sm:$0xff] %v591
    %848 = vst [vmem:[#allocation7 + $0x168] sm:$0xff] %v592
    %849 = vst [vmem:[#allocation7 + $0x170] sm:$0xff] %v593
    %850 = vst [vmem:[#allocation7 + $0x178] sm:$0xff] %v594
    %851 = vst [vmem:[#allocation7 + $0x180] sm:$0xff] %v595
    %852 = vst [vmem:[#allocation7 + $0x188] sm:$0xff] %v596
    %853 = vst [vmem:[#allocation7 + $0x190] sm:$0xff] %v597
    %854 = vst [vmem:[#allocation7 + $0x198] sm:$0xff] %v598
    %855 = vst [vmem:[#allocation7 + $0x1a0] sm:$0xff] %v599
    %856 = vst [vmem:[#allocation7 + $0x1a8] sm:$0xff] %v600
    %857 = vst [vmem:[#allocation7 + $0x1b0] sm:$0xff] %v601
    %858 = vst [vmem:[#allocation7 + $0x1b8] sm:$0xff] %v602
    %859 = vst [vmem:[#allocation7 + $0x1c0] sm:$0xff] %v603
    %860 = vst [vmem:[#allocation7 + $0x1c8] sm:$0xff] %v604
    %861 = vst [vmem:[#allocation7 + $0x1d0] sm:$0xff] %v605
    %862 = vst [vmem:[#allocation7 + $0x1d8] sm:$0xff] %v606
    %863 = vst [vmem:[#allocation7 + $0x1e0] sm:$0xff] %v607
    %864 = vst [vmem:[#allocation7 + $0x1e8] sm:$0xff] %v608
    %865 = vst [vmem:[#allocation7 + $0x1f0] sm:$0xff] %v609
    %866 = vst [vmem:[#allocation7 + $0x1f8] sm:$0xff] %v610
    %867 = vst [vmem:[#allocation7 + $0x200] sm:$0xff] %v611
    %868 = vst [vmem:[#allocation7 + $0x208] sm:$0xff] %v612
    %869 = vst [vmem:[#allocation7 + $0x210] sm:$0xff] %v613
    %870 = vst [vmem:[#allocation7 + $0x218] sm:$0xff] %v614
    %871 = vst [vmem:[#allocation7 + $0x220] sm:$0xff] %v615
    %872 = vst [vmem:[#allocation7 + $0x228] sm:$0xff] %v616
    %873 = vst [vmem:[#allocation7 + $0x230] sm:$0xff] %v617
    %874 = vst [vmem:[#allocation7 + $0x238] sm:$0xff] %v618
    %875 = vst [vmem:[#allocation7 + $0x240] sm:$0xff] %v619
    %876 = vst [vmem:[#allocation7 + $0x248] sm:$0xff] %v620
    %877 = vst [vmem:[#allocation7 + $0x250] sm:$0xff] %v621
    %878 = vst [vmem:[#allocation7 + $0x258] sm:$0xff] %v622
    %879 = vst [vmem:[#allocation7 + $0x260] sm:$0xff] %v623
    %880 = vst [vmem:[#allocation7 + $0x268] sm:$0xff] %v624
    %881 = vst [vmem:[#allocation7 + $0x270] sm:$0xff] %v625
    %882 = vst [vmem:[#allocation7 + $0x278] sm:$0xff] %v626
    %883 = vst [vmem:[#allocation7 + $0x280] sm:$0xff] %v627
    %884 = vst [vmem:[#allocation7 + $0x288] sm:$0xff] %v628
    %885 = vst [vmem:[#allocation7 + $0x290] sm:$0xff] %v629
    %886 = vst [vmem:[#allocation7 + $0x298] sm:$0xff] %v630
    %887 = vst [vmem:[#allocation7 + $0x2a0] sm:$0xff] %v631
    %888 = vst [vmem:[#allocation7 + $0x2a8] sm:$0xff] %v632
    %889 = vst [vmem:[#allocation7 + $0x2b0] sm:$0xff] %v633
    %890 = vst [vmem:[#allocation7 + $0x2b8] sm:$0xff] %v634
    %891 = vst [vmem:[#allocation7 + $0x2c0] sm:$0xff] %v635
    %892 = vst [vmem:[#allocation7 + $0x2c8] sm:$0xff] %v636
    %893 = vst [vmem:[#allocation7 + $0x2d0] sm:$0xff] %v637
    %894 = vst [vmem:[#allocation7 + $0x2d8] sm:$0xff] %v638
    %895 = vst [vmem:[#allocation7 + $0x2e0] sm:$0xff] %v639
    %896 = vst [vmem:[#allocation7 + $0x2e8] sm:$0xff] %v640
    %897 = vst [vmem:[#allocation7 + $0x2f0] sm:$0xff] %v641
    %898 = vst [vmem:[#allocation7 + $0x2f8] sm:$0xff] %v642
    %899 = vst [vmem:[#allocation7 + $0x300] sm:$0xff] %v643
    %900 = vst [vmem:[#allocation7 + $0x308] sm:$0xff] %v644
    %901 = vst [vmem:[#allocation7 + $0x310] sm:$0xff] %v645
    %902 = vst [vmem:[#allocation7 + $0x318] sm:$0xff] %v646
    %903 = vst [vmem:[#allocation7 + $0x320] sm:$0xff] %v647
    %904 = vst [vmem:[#allocation7 + $0x328] sm:$0xff] %v648
    %905 = vst [vmem:[#allocation7 + $0x330] sm:$0xff] %v649
    %906 = vst [vmem:[#allocation7 + $0x338] sm:$0xff] %v650
    %907 = vst [vmem:[#allocation7 + $0x340] sm:$0xff] %v651
    %908 = vst [vmem:[#allocation7 + $0x348] sm:$0xff] %v652
    %909 = vst [vmem:[#allocation7 + $0x350] sm:$0xff] %v653
    %910 = vst [vmem:[#allocation7 + $0x358] sm:$0xff] %v654
    %911 = vst [vmem:[#allocation7 + $0x360] sm:$0xff] %v655
    %912 = vst [vmem:[#allocation7 + $0x368] sm:$0xff] %v656
    %913 = vst [vmem:[#allocation7 + $0x370] sm:$0xff] %v657
    %914 = vst [vmem:[#allocation7 + $0x378] sm:$0xff] %v658
    %915 = vst [vmem:[#allocation7 + $0x380] sm:$0xff] %v659
    %916 = vst [vmem:[#allocation7 + $0x388] sm:$0xff] %v660
    %917 = vst [vmem:[#allocation7 + $0x390] sm:$0xff] %v661
    %918 = vst [vmem:[#allocation7 + $0x398] sm:$0xff] %v662
    %919 = vst [vmem:[#allocation7 + $0x3a0] sm:$0xff] %v663
    %920 = vst [vmem:[#allocation7 + $0x3a8] sm:$0xff] %v664
    %921 = vst [vmem:[#allocation7 + $0x3b0] sm:$0xff] %v665
    %922 = vst [vmem:[#allocation7 + $0x3b8] sm:$0xff] %v666
    %923 = vst [vmem:[#allocation7 + $0x3c0] sm:$0xff] %v667
    %924 = vst [vmem:[#allocation7 + $0x3c8] sm:$0xff] %v668
    %925 = vst [vmem:[#allocation7 + $0x3d0] sm:$0xff] %v669
    %926 = vst [vmem:[#allocation7 + $0x3d8] sm:$0xff] %v670
    %927 = vst [vmem:[#allocation7 + $0x3e0] sm:$0xff] %v671
    %928 = vst [vmem:[#allocation7 + $0x3e8] sm:$0xff] %v672
    %929 = vst [vmem:[#allocation7 + $0x3f0] sm:$0xff] %v673
    %930 = vst [vmem:[#allocation7 + $0x3f8] sm:$0xff] %v674
    %931 = vst [vmem:[#allocation7 + $0x400] sm:$0xff] %v675
    %932 = vst [vmem:[#allocation7 + $0x408] sm:$0xff] %v676
    %933 = vst [vmem:[#allocation7 + $0x410] sm:$0xff] %v677
    %934 = vst [vmem:[#allocation7 + $0x418] sm:$0xff] %v678
    %935 = vst [vmem:[#allocation7 + $0x420] sm:$0xff] %v679
    %936 = vst [vmem:[#allocation7 + $0x428] sm:$0xff] %v680
    %937 = vst [vmem:[#allocation7 + $0x430] sm:$0xff] %v681
    %938 = vst [vmem:[#allocation7 + $0x438] sm:$0xff] %v682
    %939 = vst [vmem:[#allocation7 + $0x440] sm:$0xff] %v683
    %940 = vst [vmem:[#allocation7 + $0x448] sm:$0xff] %v684
    %941 = vst [vmem:[#allocation7 + $0x450] sm:$0xff] %v685
    %942 = vst [vmem:[#allocation7 + $0x458] sm:$0xff] %v686
    %943 = vst [vmem:[#allocation7 + $0x460] sm:$0xff] %v687
    %944 = vst [vmem:[#allocation7 + $0x468] sm:$0xff] %v688
    %945 = vst [vmem:[#allocation7 + $0x470] sm:$0xff] %v689
    %946 = vst [vmem:[#allocation7 + $0x478] sm:$0xff] %v690
    %947 = vst [vmem:[#allocation7 + $0x480] sm:$0xff] %v691
    %948 = vst [vmem:[#allocation7 + $0x488] sm:$0xff] %v692
    %949 = vst [vmem:[#allocation7 + $0x490] sm:$0xff] %v693
    %950 = vst [vmem:[#allocation7 + $0x498] sm:$0xff] %v694
    %951 = vst [vmem:[#allocation7 + $0x4a0] sm:$0xff] %v695
    %952 = vst [vmem:[#allocation7 + $0x4a8] sm:$0xff] %v696
    %953 = vst [vmem:[#allocation7 + $0x4b0] sm:$0xff] %v697
    %954 = vst [vmem:[#allocation7 + $0x4b8] sm:$0xff] %v698
    %955 = vst [vmem:[#allocation7 + $0x4c0] sm:$0xff] %v699
    %956 = vst [vmem:[#allocation7 + $0x4c8] sm:$0xff] %v700
    %957 = vst [vmem:[#allocation7 + $0x4d0] sm:$0xff] %v701
    %958 = vst [vmem:[#allocation7 + $0x4d8] sm:$0xff] %v702
    %959 = vst [vmem:[#allocation7 + $0x4e0] sm:$0xff] %v703
    %960 = vst [vmem:[#allocation7 + $0x4e8] sm:$0xff] %v704
    %961 = vst [vmem:[#allocation7 + $0x4f0] sm:$0xff] %v705
    %962 = vst [vmem:[#allocation7 + $0x4f8] sm:$0xff] %v706
    %963 = vst [vmem:[#allocation7 + $0x500] sm:$0xff] %v707
    %964 = vst [vmem:[#allocation7 + $0x508] sm:$0xff] %v708
    %965 = vst [vmem:[#allocation7 + $0x510] sm:$0xff] %v709
    %966 = vst [vmem:[#allocation7 + $0x518] sm:$0xff] %v710
    %967 = vst [vmem:[#allocation7 + $0x520] sm:$0xff] %v711
    %968 = vst [vmem:[#allocation7 + $0x528] sm:$0xff] %v712
    %969 = vst [vmem:[#allocation7 + $0x530] sm:$0xff] %v713
    %970 = vst [vmem:[#allocation7 + $0x538] sm:$0xff] %v714
    %971 = vst [vmem:[#allocation7 + $0x540] sm:$0xff] %v715
    %972 = vst [vmem:[#allocation7 + $0x548] sm:$0xff] %v716
    %973 = vst [vmem:[#allocation7 + $0x550] sm:$0xff] %v717
    %974 = vst [vmem:[#allocation7 + $0x558] sm:$0xff] %v718
    %975 = vst [vmem:[#allocation7 + $0x560] sm:$0xff] %v719
    %976 = vst [vmem:[#allocation7 + $0x568] sm:$0xff] %v720
    %977 = vst [vmem:[#allocation7 + $0x570] sm:$0xff] %v721
    %978 = vst [vmem:[#allocation7 + $0x578] sm:$0xff] %v722
    %979 = vst [vmem:[#allocation7 + $0x580] sm:$0xff] %v723
    %980 = vst [vmem:[#allocation7 + $0x588] sm:$0xff] %v724
    %981 = vst [vmem:[#allocation7 + $0x590] sm:$0xff] %v725
    %982 = vst [vmem:[#allocation7 + $0x598] sm:$0xff] %v726
    %983 = vst [vmem:[#allocation7 + $0x5a0] sm:$0xff] %v727
    %984 = vst [vmem:[#allocation7 + $0x5a8] sm:$0xff] %v728
    %985 = vst [vmem:[#allocation7 + $0x5b0] sm:$0xff] %v729
    %986 = vst [vmem:[#allocation7 + $0x5b8] sm:$0xff] %v730
    %987 = vst [vmem:[#allocation7 + $0x5c0] sm:$0xff] %v731
    %988 = vst [vmem:[#allocation7 + $0x5c8] sm:$0xff] %v732
    %989 = vst [vmem:[#allocation7 + $0x5d0] sm:$0xff] %v733
    %990 = vst [vmem:[#allocation7 + $0x5d8] sm:$0xff] %v734
    %991 = vst [vmem:[#allocation7 + $0x5e0] sm:$0xff] %v735
    %992 = vst [vmem:[#allocation7 + $0x5e8] sm:$0xff] %v736
    %993 = vst [vmem:[#allocation7 + $0x5f0] sm:$0xff] %v737
    %994 = vst [vmem:[#allocation7 + $0x5f8] sm:$0xff] %v738
    %995 = vst [vmem:[#allocation7 + $0x600] sm:$0xff] %v739
    %996 = vst [vmem:[#allocation7 + $0x608] sm:$0xff] %v740
    %997 = vst [vmem:[#allocation7 + $0x610] sm:$0xff] %v741
    %998 = vst [vmem:[#allocation7 + $0x618] sm:$0xff] %v742
    %999 = vst [vmem:[#allocation7 + $0x620] sm:$0xff] %v743
    %1000 = vst [vmem:[#allocation7 + $0x628] sm:$0xff] %v744
    %1001 = vst [vmem:[#allocation7 + $0x630] sm:$0xff] %v745
    %1002 = vst [vmem:[#allocation7 + $0x638] sm:$0xff] %v746
    %1003 = vst [vmem:[#allocation7 + $0x640] sm:$0xff] %v747
    %1004 = vst [vmem:[#allocation7 + $0x648] sm:$0xff] %v748
    %1005 = vst [vmem:[#allocation7 + $0x650] sm:$0xff] %v749
    %1006 = vst [vmem:[#allocation7 + $0x658] sm:$0xff] %v750
    %1007 = vst [vmem:[#allocation7 + $0x660] sm:$0xff] %v751
    %1008 = vst [vmem:[#allocation7 + $0x668] sm:$0xff] %v752
    %1009 = vst [vmem:[#allocation7 + $0x670] sm:$0xff] %v753
    %1010 = vst [vmem:[#allocation7 + $0x678] sm:$0xff] %v754
    %1011 = vst [vmem:[#allocation7 + $0x680] sm:$0xff] %v755
    %1012 = vst [vmem:[#allocation7 + $0x688] sm:$0xff] %v756
    %1013 = vst [vmem:[#allocation7 + $0x690] sm:$0xff] %v757
    %1014 = vst [vmem:[#allocation7 + $0x698] sm:$0xff] %v758
    %1015 = vst [vmem:[#allocation7 + $0x6a0] sm:$0xff] %v759
    %1016 = vst [vmem:[#allocation7 + $0x6a8] sm:$0xff] %v760
    %1017 = vst [vmem:[#allocation7 + $0x6b0] sm:$0xff] %v761
    %1018 = vst [vmem:[#allocation7 + $0x6b8] sm:$0xff] %v762
    %1019 = vst [vmem:[#allocation7 + $0x6c0] sm:$0xff] %v763
    %1020 = vst [vmem:[#allocation7 + $0x6c8] sm:$0xff] %v764
    %1021 = vst [vmem:[#allocation7 + $0x6d0] sm:$0xff] %v765
    %1022 = vst [vmem:[#allocation7 + $0x6d8] sm:$0xff] %v766
    %1023 = vst [vmem:[#allocation7 + $0x6e0] sm:$0xff] %v767
    %1024 = vst [vmem:[#allocation7 + $0x6e8] sm:$0xff] %v768
    %1025 = vst [vmem:[#allocation7 + $0x6f0] sm:$0xff] %v769
    %1026 = vst [vmem:[#allocation7 + $0x6f8] sm:$0xff] %v770
    %1027 = vst [vmem:[#allocation7 + $0x700] sm:$0xff] %v771
    %1028 = vst [vmem:[#allocation7 + $0x708] sm:$0xff] %v772
    %1029 = vst [vmem:[#allocation7 + $0x710] sm:$0xff] %v773
    %1030 = vst [vmem:[#allocation7 + $0x718] sm:$0xff] %v774
    %1031 = vst [vmem:[#allocation7 + $0x720] sm:$0xff] %v775
    %1032 = vst [vmem:[#allocation7 + $0x728] sm:$0xff] %v776
    %1033 = vst [vmem:[#allocation7 + $0x730] sm:$0xff] %v777
    %1034 = vst [vmem:[#allocation7 + $0x738] sm:$0xff] %v778
    %1035 = vst [vmem:[#allocation7 + $0x740] sm:$0xff] %v779
    %1036 = vst [vmem:[#allocation7 + $0x748] sm:$0xff] %v780
    %1037 = vst [vmem:[#allocation7 + $0x750] sm:$0xff] %v781
    %1038 = vst [vmem:[#allocation7 + $0x758] sm:$0xff] %v782
    %1039 = vst [vmem:[#allocation7 + $0x760] sm:$0xff] %v783
    %1040 = vst [vmem:[#allocation7 + $0x768] sm:$0xff] %v784
    %1041 = vst [vmem:[#allocation7 + $0x770] sm:$0xff] %v785
    %1042 = vst [vmem:[#allocation7 + $0x778] sm:$0xff] %v786
    %1043 = vst [vmem:[#allocation7 + $0x780] sm:$0xff] %v787
    %1044 = vst [vmem:[#allocation7 + $0x788] sm:$0xff] %v788
    %1045 = vst [vmem:[#allocation7 + $0x790] sm:$0xff] %v789
    %1046 = vst [vmem:[#allocation7 + $0x798] sm:$0xff] %v790
    %1047 = vst [vmem:[#allocation7 + $0x7a0] sm:$0xff] %v791
    %1048 = vst [vmem:[#allocation7 + $0x7a8] sm:$0xff] %v792
    %1049 = vst [vmem:[#allocation7 + $0x7b0] sm:$0xff] %v793
    %1050 = vst [vmem:[#allocation7 + $0x7b8] sm:$0xff] %v794
    %1051 = vst [vmem:[#allocation7 + $0x7c0] sm:$0xff] %v795
    %1052 = vst [vmem:[#allocation7 + $0x7c8] sm:$0xff] %v796
    %1053 = vst [vmem:[#allocation7 + $0x7d0] sm:$0xff] %v797
    %1054 = vst [vmem:[#allocation7 + $0x7d8] sm:$0xff] %v798
    %1055 = vst [vmem:[#allocation7 + $0x7e0] sm:$0xff] %v799
    %1056 = vst [vmem:[#allocation7 + $0x7e8] sm:$0xff] %v800
    %1057 = vst [vmem:[#allocation7 + $0x7f0] sm:$0xff] %v801
    %1058 = vst [vmem:[#allocation7 + $0x7f8] sm:$0xff] %v802
    // Predicated region
    $region18: #{tpu_custom_call.1} parent=1 // pred_check
      _
    $region19: #{tpu_custom_call.1} parent=1 // pred_check_branch
      %1060 = sbr.rel (0) target = $region21
    $region20: #{tpu_custom_call.1} parent=1 // pred_region
      %s1062 = ssub.s32 32768, 32768
      %1063 = vsyncadd [#allocation6], %s1062
      %s1064 = sshll.u32 [#allocation7], 4
      %s1065 = int_to_ptr.vmem [resolvable:$true] %s1064
      %1070 = dma.vmem_to_hbm [thread:$0]  %s1065, 32768, %s3, [#allocation6], 512, 512, 32
    $region21: #{tpu_custom_call.1} parent=1 // pred_fallthru
      _
    // Predicated region
    $region22: #{tpu_custom_call.1} parent=1 // pred_check
      _
    $region23: #{tpu_custom_call.1} parent=1 // pred_check_branch
      %1072 = sbr.rel (0) target = $region25
    $region24: #{tpu_custom_call.1} parent=1 // pred_region
      %1073 = dma.done [#allocation6], 32768
    $region25: #{tpu_custom_call.1} parent=1 // pred_fallthru
      _
    %1074 = vsyncpa [#allocation5], 1
    %1075 = vsyncpa [#allocation6], 1

</llo_original>
